<compile_context>
chip_gen: v5e
topology: v5e:2x2
jax: 0.10.0
libtpu: 0.0.40
codegen_flags: <defaults>
</compile_context>

<pallas_src>
import jax
import jax.numpy as jnp
from jax.experimental import pallas as pl
from jax.experimental.pallas import tpu as pltpu


def _split_concat_kernel(x_ref, cat_ref, s0_ref, s1_ref, s2_ref):
    # x_ref: (N, C=3, H*W) resident in VMEM, lane-dense trailing dim.
    # concat(split(x)) == x, so the "concatenated" output is a straight copy;
    # the three splits are static channel selects of the same tile, all
    # written within this single kernel invocation.
    x = x_ref[...]
    cat_ref[...] = x
    s0_ref[...] = x[:, 0, :]
    s1_ref[...] = x[:, 1, :]
    s2_ref[...] = x[:, 2, :]


def model_forward(v1):
    """Pallas equivalent of Model.forward -> (concatenated, (s0, s1, s2))."""
    n, c, h, w = v1.shape
    assert c == 3, "torch.split(v1, [1, 1, 1], dim=1) requires exactly 3 channels"
    hw = h * w
    x3d = v1.reshape(n, c, hw)  # contiguous view; trailing dim 256 = 2*128

    vmem = pltpu.MemorySpace.VMEM
    cat3d, s0, s1, s2 = pl.pallas_call(
        _split_concat_kernel,
        out_shape=(
            jax.ShapeDtypeStruct((n, c, hw), v1.dtype),
            jax.ShapeDtypeStruct((n, hw), v1.dtype),
            jax.ShapeDtypeStruct((n, hw), v1.dtype),
            jax.ShapeDtypeStruct((n, hw), v1.dtype),
        ),
        # Gridless: whole arrays staged straight into VMEM, one kernel body run.
        in_specs=[pl.BlockSpec(memory_space=vmem)],
        out_specs=(
            pl.BlockSpec(memory_space=vmem),
            pl.BlockSpec(memory_space=vmem),
            pl.BlockSpec(memory_space=vmem),
            pl.BlockSpec(memory_space=vmem),
        ),
    )(x3d)

    concatenated = cat3d.reshape(n, c, h, w)
    splits = (
        s0.reshape(n, 1, h, w),
        s1.reshape(n, 1, h, w),
        s2.reshape(n, 1, h, w),
    )
    return concatenated, splits


if __name__ == "__main__":
    key = jax.random.PRNGKey(0)
    # v1: (batch=2, channels=3, H=16, W=16) — channels must be 3 for split [1,1,1].
    v1 = jax.random.normal(key, (2, 3, 16, 16), jnp.float32)

    fwd = jax.jit(model_forward)
    concatenated, splits = fwd(v1)
    concatenated = jax.block_until_ready(concatenated)
    splits = jax.block_until_ready(splits)

    # Correctness vs. reference semantics.
    assert concatenated.shape == v1.shape
    assert jnp.allclose(concatenated, v1), "concat(split(v1)) must equal v1"
    assert len(splits) == 3
    for i, s in enumerate(splits):
        assert s.shape == (2, 1, 16, 16)
        assert jnp.allclose(s, v1[:, i:i + 1, :, :])

    print("KERNEL_OK")
</pallas_src>

<mosaic_0001>
module attributes {stable_mosaic.version = 11 : i64} {
  func.func @_split_concat_kernel(%arg0: memref<2x3x256xf32, #tpu.memory_space<vmem>>, %arg1: memref<2x3x256xf32, #tpu.memory_space<vmem>>, %arg2: memref<2x256xf32, #tpu.memory_space<vmem>>, %arg3: memref<2x256xf32, #tpu.memory_space<vmem>>, %arg4: memref<2x256xf32, #tpu.memory_space<vmem>>) attributes {dimension_semantics = [], scalar_prefetch = 0 : i64, scratch_operands = 0 : i64, tpu.core_type = #tpu.core_type<tc>} {
    %c0 = arith.constant 0 : index
    %c0_0 = arith.constant 0 : index
    %c0_1 = arith.constant 0 : index
    %0 = vector.load %arg0[%c0, %c0_0, %c0_1] : memref<2x3x256xf32, #tpu.memory_space<vmem>>, vector<2x3x256xf32>
    %c0_2 = arith.constant 0 : index
    %c0_3 = arith.constant 0 : index
    %c0_4 = arith.constant 0 : index
    %1 = vector.load %arg1[%c0_2, %c0_3, %c0_4] : memref<2x3x256xf32, #tpu.memory_space<vmem>>, vector<2x3x256xf32>
    tpu.vector_store %arg1[%c0_2, %c0_3, %c0_4], %0 {strides = array<i32>} : memref<2x3x256xf32, #tpu.memory_space<vmem>>, vector<2x3x256xf32>,
    %2 = vector.extract_strided_slice %0 {offsets = [0, 0, 0], sizes = [2, 1, 256], strides = [1, 1, 1]} : vector<2x3x256xf32> to vector<2x1x256xf32>
    %3 = vector.shape_cast %2 : vector<2x1x256xf32> to vector<2x256xf32>
    %c0_5 = arith.constant 0 : index
    %c0_6 = arith.constant 0 : index
    %4 = vector.load %arg2[%c0_5, %c0_6] : memref<2x256xf32, #tpu.memory_space<vmem>>, vector<2x256xf32>
    tpu.vector_store %arg2[%c0_5, %c0_6], %3 {strides = array<i32>} : memref<2x256xf32, #tpu.memory_space<vmem>>, vector<2x256xf32>,
    %5 = vector.extract_strided_slice %0 {offsets = [0, 1, 0], sizes = [2, 1, 256], strides = [1, 1, 1]} : vector<2x3x256xf32> to vector<2x1x256xf32>
    %6 = vector.shape_cast %5 : vector<2x1x256xf32> to vector<2x256xf32>
    %c0_7 = arith.constant 0 : index
    %c0_8 = arith.constant 0 : index
    %7 = vector.load %arg3[%c0_7, %c0_8] : memref<2x256xf32, #tpu.memory_space<vmem>>, vector<2x256xf32>
    tpu.vector_store %arg3[%c0_7, %c0_8], %6 {strides = array<i32>} : memref<2x256xf32, #tpu.memory_space<vmem>>, vector<2x256xf32>,
    %8 = vector.extract_strided_slice %0 {offsets = [0, 2, 0], sizes = [2, 1, 256], strides = [1, 1, 1]} : vector<2x3x256xf32> to vector<2x1x256xf32>
    %9 = vector.shape_cast %8 : vector<2x1x256xf32> to vector<2x256xf32>
    %c0_9 = arith.constant 0 : index
    %c0_10 = arith.constant 0 : index
    %10 = vector.load %arg4[%c0_9, %c0_10] : memref<2x256xf32, #tpu.memory_space<vmem>>, vector<2x256xf32>
    tpu.vector_store %arg4[%c0_9, %c0_10], %9 {strides = array<i32>} : memref<2x256xf32, #tpu.memory_space<vmem>>, vector<2x256xf32>,
    return
  }
}

</mosaic_0001>

<llo_original>
// kernel: model_forward.1
$region0: #{model_forward.1}
  #allocation0 [shape = 'u32[]', space=smem, size = 0x4, offset = 0x4, fixed_abs, tag = 'smem constant byte address 0x4 - core index']
  #allocation1 [shape = 'u32[72,128]{1,0:T(1,128)}', space=vmem, size = 0x9000, scoped, tag = 'internal scratch']
  %s0 = inlined_call_operand.vmem [shape: f32[2,3,256], index: 0, kind: input, shape index: {}]
  %s1 = inlined_call_operand.vmem [shape: f32[2,3,256], index: 1, kind: output, shape index: {0}]
  %s2 = inlined_call_operand.vmem [shape: f32[2,256], index: 2, kind: output, shape index: {1}]
  %s3 = inlined_call_operand.vmem [shape: f32[2,256], index: 3, kind: output, shape index: {2}]
  %s4 = inlined_call_operand.vmem [shape: f32[2,256], index: 4, kind: output, shape index: {3}]
  %5 = xla_tuple %s1, %s2, %s3, %s4
  %s6 = sld [smem:[#allocation0]]
  $region38: #{model_forward.1} parent=0
    _
  %s8 = ssub.s32 1, %s6
  %s9 = scalar_select 0, %s8, %s6
  // Predicated region
  $region2: #{model_forward.1} parent=0 // pred_check
    _
  $region3: #{model_forward.1} parent=0 // pred_check_branch
    %11 = sbr.rel (0) target = $region5
  $region4: #{model_forward.1} parent=0 // pred_region
    _
  $region5: #{model_forward.1} parent=0 // pred_fallthru
    _
  %v12 = vld [vmem:[%s0] sm:$0x77]
  %v13 = vld [vmem:[%s0 + $0x8] sm:$0x77]
  %14 = vst [vmem:[%s1] sm:$0x77] %v12
  %15 = vst [vmem:[%s1 + $0x8] sm:$0x77] %v13
  %v18 = vrot.slane %v12, 2
  %v19 = vrot.slane %v13, 2
  %vm20 = vcmask 1041408
  %v21 = vsel %vm20, %v12, %v18
  %v22 = vsel %vm20, %v13, %v19
  %vm23 = vcmask 1044484
  %v24 = vsel %vm23, %v21, %v21
  %vm25 = vcmask 1046534
  %v26 = vsel %vm25, %v21, %v24
  %v27 = vrot.slane %v22, 7
  %vm28 = vcmask 1041409
  %v29 = vsel %vm28, %v27, %v26
  %vm30 = vcmask 1043459
  %v31 = vsel %vm30, %v27, %v29
  %vm32 = vcmask 1045509
  %v33 = vsel %vm32, %v27, %v31
  %vm34 = vcmask 1047559
  %v35 = vsel %vm34, %v27, %v33
  %37 = vst [vmem:[%s2] sm:$0xf] %v35
  %v38 = vrot.slane %v21, 1
  %v39 = vsel %vm23, %v38, %v38
  %v40 = vsel %vm25, %v38, %v39
  %v41 = vsel %vm28, %v22, %v40
  %v42 = vsel %vm30, %v22, %v41
  %v43 = vsel %vm32, %v22, %v42
  %v44 = vsel %vm34, %v22, %v43
  %46 = vst [vmem:[%s3] sm:$0xf] %v44
  %47 = vst.sshfl [vmem:[#allocation1] sm:$0xff pattern:$0x75643120] %v12
  %s48 = scalar_lea.vmem [#allocation1], 1
  %v49 = vld [vmem:[%s48] ss:$2 sm:$0xff]
  %50 = vst.sshfl [vmem:[#allocation1 + $0x10] sm:$0xff pattern:$0x75643120] %v13
  %s51 = scalar_lea.vmem [#allocation1], 17
  %v52 = vld [vmem:[%s51] ss:$2 sm:$0xff]
  %v53 = vsel %vm23, %v49, %v49
  %v54 = vsel %vm25, %v49, %v53
  %v55 = vrot.slane %v52, 7
  %v56 = vsel %vm28, %v55, %v54
  %v57 = vsel %vm30, %v55, %v56
  %v58 = vsel %vm32, %v55, %v57
  %v59 = vsel %vm34, %v55, %v58
  %61 = vst [vmem:[%s4] sm:$0xf] %v59
  // Predicated region
  $region6: #{model_forward.1} parent=0 // pred_check
    _
  $region7: #{model_forward.1} parent=0 // pred_check_branch
    %63 = sbr.rel (0) target = $region9
  $region8: #{model_forward.1} parent=0 // pred_region
    _
  $region9: #{model_forward.1} parent=0 // pred_fallthru
    _
  // Predicated region
  $region10: #{model_forward.1} parent=0 // pred_check
    _
  $region11: #{model_forward.1} parent=0 // pred_check_branch
    %65 = sbr.rel (0) target = $region13
  $region12: #{model_forward.1} parent=0 // pred_region
    _
  $region13: #{model_forward.1} parent=0 // pred_fallthru
    _
  // Predicated region
  $region14: #{model_forward.1} parent=0 // pred_check
    _
  $region15: #{model_forward.1} parent=0 // pred_check_branch
    %67 = sbr.rel (0) target = $region17
  $region16: #{model_forward.1} parent=0 // pred_region
    _
  $region17: #{model_forward.1} parent=0 // pred_fallthru
    _
  // Predicated region
  $region18: #{model_forward.1} parent=0 // pred_check
    _
  $region19: #{model_forward.1} parent=0 // pred_check_branch
    %69 = sbr.rel (0) target = $region21
  $region20: #{model_forward.1} parent=0 // pred_region
    _
  $region21: #{model_forward.1} parent=0 // pred_fallthru
    _
  // Predicated region
  $region22: #{model_forward.1} parent=0 // pred_check
    _
  $region23: #{model_forward.1} parent=0 // pred_check_branch
    %71 = sbr.rel (0) target = $region25
  $region24: #{model_forward.1} parent=0 // pred_region
    _
  $region25: #{model_forward.1} parent=0 // pred_fallthru
    _
  // Predicated region
  $region26: #{model_forward.1} parent=0 // pred_check
    _
  $region27: #{model_forward.1} parent=0 // pred_check_branch
    %73 = sbr.rel (0) target = $region29
  $region28: #{model_forward.1} parent=0 // pred_region
    _
  $region29: #{model_forward.1} parent=0 // pred_fallthru
    _
  // Predicated region
  $region30: #{model_forward.1} parent=0 // pred_check
    _
  $region31: #{model_forward.1} parent=0 // pred_check_branch
    %75 = sbr.rel (0) target = $region33
  $region32: #{model_forward.1} parent=0 // pred_region
    _
  $region33: #{model_forward.1} parent=0 // pred_fallthru
    _
  // Predicated region
  $region34: #{model_forward.1} parent=0 // pred_check
    _
  $region35: #{model_forward.1} parent=0 // pred_check_branch
    %77 = sbr.rel (0) target = $region37
  $region36: #{model_forward.1} parent=0 // pred_region
    _
  $region37: #{model_forward.1} parent=0 // pred_fallthru
    _

</llo_original>
